<compile_context>
chip_gen: v7x
topology: tpu7x:2x2x1
jax: 0.10.0
libtpu: 0.0.40
codegen_flags: <defaults>
</compile_context>

<pallas_src>
import jax
import jax.numpy as jnp
from jax.experimental import pallas as pl
from jax.experimental.pallas import tpu as pltpu


def _round_up(n, m):
    return ((n + m - 1) // m) * m


def _mlp_kernel(x_ref, w1_ref, b1_ref, w2_ref, b2_ref, w3_ref, b3_ref, o_ref):
    # x tile: (TB, D) bf16; weights resident in VMEM across all grid steps.
    x = x_ref[...]

    # fc1 (MXU, bf16 in / f32 acc) + bias + ReLU in f32.
    h1 = jnp.dot(x, w1_ref[...], preferred_element_type=jnp.float32)
    h1 = jnp.maximum(h1 + b1_ref[...], 0.0)

    # fc2 (MXU, bf16 in / f32 acc) + bias + ReLU in f32.
    h2 = jnp.dot(h1.astype(jnp.bfloat16), w2_ref[...],
                 preferred_element_type=jnp.float32)
    h2 = jnp.maximum(h2 + b2_ref[...], 0.0)

    # Output head: contract the hidden dim of (1, H) against (TB, H) so the
    # result is (1, TB) with the batch on the lane axis -> unmasked, lane-dense
    # HBM writeback for this step's output slab.
    v = jax.lax.dot_general(
        w3_ref[...], h2,
        dimension_numbers=(((1,), (1,)), ((), ())),
        preferred_element_type=jnp.float32,
    )
    v = v + b3_ref[...]                                # (1, TB), f32
    o_ref[...] = v.reshape(1, 1, v.shape[-1]).astype(o_ref.dtype)


def value_network_forward(x, kp, *, block_rows=None):
    """x: (B, input_dim) float32. kp: kernel-ready params from prepare_params()."""
    B, D = x.shape

    # Batch tile: multiple of 128 (lane-dense output), 512-1024 rows for real
    # batches, capped so small batches don't over-pad. VMEM per step is tiny
    # (TB*D bf16 + TB f32 + resident weights), far under v7x's 64 MiB.
    if block_rows is None:
        block_rows = min(1024, _round_up(max(B, 1), 128))
    tb = _round_up(block_rows, 128)
    b_pad = _round_up(B, tb)
    nt = b_pad // tb

    x_p = jnp.pad(x, ((0, b_pad - B), (0, 0))) if b_pad != B else x
    x_bf = x_p.astype(jnp.bfloat16)   # halves the dominant per-tile HBM traffic

    out3d = pl.pallas_call(
        _mlp_kernel,
        out_shape=jax.ShapeDtypeStruct((nt, 1, tb), jnp.float32),
        grid=(nt,),
        in_specs=[
            pl.BlockSpec((tb, D), lambda i: (i, 0)),          # x: pipelined tiles
            pl.BlockSpec(kp["w1"].shape, lambda i: (0, 0)),   # weights: resident
            pl.BlockSpec(kp["b1"].shape, lambda i: (0, 0)),
            pl.BlockSpec(kp["w2"].shape, lambda i: (0, 0)),
            pl.BlockSpec(kp["b2"].shape, lambda i: (0, 0)),
            pl.BlockSpec(kp["w3"].shape, lambda i: (0, 0)),
            pl.BlockSpec(kp["b3"].shape, lambda i: (0, 0)),
        ],
        out_specs=pl.BlockSpec((1, 1, tb), lambda i: (i, 0, 0)),
        compiler_params=pltpu.CompilerParams(
            dimension_semantics=("parallel",)),               # megacore on v7x
    )(x_bf, kp["w1"], kp["b1"], kp["w2"], kp["b2"], kp["w3"], kp["b3"])

    return out3d.reshape(b_pad, 1)[:B]


def init_params(key, input_dim, hidden_size):
    """Logical f32 params (pre-transposed to (in, out)), mimicking nn.Linear init."""
    k = jax.random.split(key, 6)

    def uinit(kk, shape, fan_in):
        bound = 1.0 / jnp.sqrt(jnp.float32(fan_in))
        return jax.random.uniform(kk, shape, jnp.float32, -bound, bound)

    return {
        "w1": uinit(k[0], (input_dim, hidden_size), input_dim),
        "b1": uinit(k[1], (hidden_size,), input_dim),
        "w2": uinit(k[2], (hidden_size, hidden_size), hidden_size),
        "b2": uinit(k[3], (hidden_size,), hidden_size),
        "w3": uinit(k[4], (hidden_size, 1), hidden_size),
        "b3": uinit(k[5], (1,), hidden_size),
    }


def prepare_params(params, lane=128):
    """Zero-pad hidden dim to a lane multiple (exact) and cast MXU operands to bf16."""
    h = params["w1"].shape[1]
    hp = _round_up(h, lane)
    ph = hp - h
    w1 = jnp.pad(params["w1"], ((0, 0), (0, ph)))
    b1 = jnp.pad(params["b1"].reshape(1, -1), ((0, 0), (0, ph)))
    w2 = jnp.pad(params["w2"], ((0, ph), (0, ph)))
    b2 = jnp.pad(params["b2"].reshape(1, -1), ((0, 0), (0, ph)))
    w3 = jnp.pad(params["w3"].reshape(-1), (0, ph)).reshape(1, hp)   # (1, Hp) row
    b3 = params["b3"].reshape(1, 1)
    return {
        "w1": w1.astype(jnp.bfloat16),
        "b1": b1.astype(jnp.float32),
        "w2": w2.astype(jnp.bfloat16),
        "b2": b2.astype(jnp.float32),
        "w3": w3.astype(jnp.float32),
        "b3": b3.astype(jnp.float32),
    }


def _reference(x, p, matmul_dtype=jnp.float32):
    c = lambda a: a.astype(matmul_dtype)
    h1 = jnp.maximum(
        jnp.dot(c(x), c(p["w1"]), preferred_element_type=jnp.float32) + p["b1"], 0.0)
    h2 = jnp.maximum(
        jnp.dot(c(h1), c(p["w2"]), preferred_element_type=jnp.float32) + p["b2"], 0.0)
    return jnp.dot(h2, p["w3"], preferred_element_type=jnp.float32) + p["b3"]


if __name__ == "__main__":
    input_dim = 16
    hidden_size = 32
    batch = 8

    key = jax.random.PRNGKey(0)
    kx, kparam_key = jax.random.split(key)
    x = jax.random.normal(kx, (batch, input_dim), jnp.float32)

    params = init_params(kparam_key, input_dim, hidden_size)
    kparams = prepare_params(params)

    out = value_network_forward(x, kparams)
    out = jax.block_until_ready(out)
    assert out.shape == (batch, 1)

    # Tight check against a reference that mirrors the kernel's bf16 matmul
    # inputs (f32 accumulation), plus a looser check against the pure-f32
    # semantics of the original PyTorch module.
    ref_bf16 = _reference(x, params, matmul_dtype=jnp.bfloat16)
    ref_f32 = _reference(x, params, matmul_dtype=jnp.float32)
    assert jnp.allclose(out, ref_bf16, atol=1e-3, rtol=1e-3), "mismatch vs bf16 reference"
    assert jnp.allclose(out, ref_f32, atol=5e-2, rtol=5e-2), "mismatch vs f32 reference"

    print("KERNEL_OK")
</pallas_src>

<mosaic_0001>
module attributes {stable_mosaic.version = 11 : i64} {
  func.func @_mlp_kernel(%arg0: i32, %arg1: memref<128x16xbf16, #tpu.memory_space<vmem>>, %arg2: memref<16x128xbf16, #tpu.memory_space<vmem>>, %arg3: memref<1x128xf32, #tpu.memory_space<vmem>>, %arg4: memref<128x128xbf16, #tpu.memory_space<vmem>>, %arg5: memref<1x128xf32, #tpu.memory_space<vmem>>, %arg6: memref<1x128xf32, #tpu.memory_space<vmem>>, %arg7: memref<1x1xf32, #tpu.memory_space<vmem>>, %arg8: memref<1x1x128xf32, #tpu.memory_space<vmem>>) attributes {dimension_semantics = [#tpu.dimension_semantics<parallel>], iteration_bounds = array<i64: 1>, scalar_prefetch = 0 : i64, scratch_operands = 0 : i64, tpu.core_type = #tpu.core_type<tc>, window_params = [{transform_indices = @transform_0, window_bounds = array<i64: 128, 16>}, {pipeline_mode = #tpu.pipeline_mode<synchronous>, transform_indices = @transform_1, window_bounds = array<i64: 16, 128>}, {pipeline_mode = #tpu.pipeline_mode<synchronous>, transform_indices = @transform_2, window_bounds = array<i64: 1, 128>}, {pipeline_mode = #tpu.pipeline_mode<synchronous>, transform_indices = @transform_3, window_bounds = array<i64: 128, 128>}, {pipeline_mode = #tpu.pipeline_mode<synchronous>, transform_indices = @transform_4, window_bounds = array<i64: 1, 128>}, {pipeline_mode = #tpu.pipeline_mode<synchronous>, transform_indices = @transform_5, window_bounds = array<i64: 1, 128>}, {pipeline_mode = #tpu.pipeline_mode<synchronous>, transform_indices = @transform_6, window_bounds = array<i64: 1, 1>}, {transform_indices = @transform_7, window_bounds = array<i64: 1, 1, 128>}]} {
    %c0 = arith.constant 0 : index
    %c0_0 = arith.constant 0 : index
    %0 = vector.load %arg1[%c0, %c0_0] : memref<128x16xbf16, #tpu.memory_space<vmem>>, vector<128x16xbf16>
    %c0_1 = arith.constant 0 : index
    %c0_2 = arith.constant 0 : index
    %1 = vector.load %arg2[%c0_1, %c0_2] : memref<16x128xbf16, #tpu.memory_space<vmem>>, vector<16x128xbf16>
    %cst = arith.constant dense<0.000000e+00> : vector<128x128xf32>
    %2 = tpu.matmul %0, %1, %cst {dimension_numbers = #tpu.dot_dimension_numbers<[1], [0], [0], [1], [0, 0, 1, 1], [], []>} : vector<128x16xbf16>, vector<16x128xbf16>, vector<128x128xf32> -> vector<128x128xf32>
    %c0_3 = arith.constant 0 : index
    %c0_4 = arith.constant 0 : index
    %3 = vector.load %arg3[%c0_3, %c0_4] : memref<1x128xf32, #tpu.memory_space<vmem>>, vector<1x128xf32>
    %4 = vector.broadcast %3 : vector<1x128xf32> to vector<128x128xf32>
    %5 = arith.addf %2, %4 : vector<128x128xf32>
    %cst_5 = arith.constant 0.000000e+00 : f32
    %6 = vector.broadcast %cst_5 : f32 to vector<128x128xf32>
    %7 = arith.maximumf %5, %6 : vector<128x128xf32>
    %8 = arith.truncf %7 : vector<128x128xf32> to vector<128x128xbf16>
    %c0_6 = arith.constant 0 : index
    %c0_7 = arith.constant 0 : index
    %9 = vector.load %arg4[%c0_6, %c0_7] : memref<128x128xbf16, #tpu.memory_space<vmem>>, vector<128x128xbf16>
    %cst_8 = arith.constant dense<0.000000e+00> : vector<128x128xf32>
    %10 = tpu.matmul %8, %9, %cst_8 {dimension_numbers = #tpu.dot_dimension_numbers<[1], [0], [0], [1], [0, 0, 1, 1], [], []>} : vector<128x128xbf16>, vector<128x128xbf16>, vector<128x128xf32> -> vector<128x128xf32>
    %c0_9 = arith.constant 0 : index
    %c0_10 = arith.constant 0 : index
    %11 = vector.load %arg5[%c0_9, %c0_10] : memref<1x128xf32, #tpu.memory_space<vmem>>, vector<1x128xf32>
    %12 = vector.broadcast %11 : vector<1x128xf32> to vector<128x128xf32>
    %13 = arith.addf %10, %12 : vector<128x128xf32>
    %cst_11 = arith.constant 0.000000e+00 : f32
    %14 = vector.broadcast %cst_11 : f32 to vector<128x128xf32>
    %15 = arith.maximumf %13, %14 : vector<128x128xf32>
    %c0_12 = arith.constant 0 : index
    %c0_13 = arith.constant 0 : index
    %16 = vector.load %arg6[%c0_12, %c0_13] : memref<1x128xf32, #tpu.memory_space<vmem>>, vector<1x128xf32>
    %cst_14 = arith.constant dense<0.000000e+00> : vector<1x128xf32>
    %17 = tpu.matmul %16, %15, %cst_14 {dimension_numbers = #tpu.dot_dimension_numbers<[1], [1], [0], [0], [0, 0, 1, 0], [], []>} : vector<1x128xf32>, vector<128x128xf32>, vector<1x128xf32> -> vector<1x128xf32>
    %c0_15 = arith.constant 0 : index
    %c0_16 = arith.constant 0 : index
    %18 = vector.load %arg7[%c0_15, %c0_16] : memref<1x1xf32, #tpu.memory_space<vmem>>, vector<1x1xf32>
    %19 = vector.broadcast %18 : vector<1x1xf32> to vector<1x128xf32>
    %20 = arith.addf %17, %19 : vector<1x128xf32>
    %21 = vector.shape_cast %20 : vector<1x128xf32> to vector<1x1x128xf32>
    %c0_17 = arith.constant 0 : index
    %c0_18 = arith.constant 0 : index
    %c0_19 = arith.constant 0 : index
    %22 = vector.load %arg8[%c0_17, %c0_18, %c0_19] : memref<1x1x128xf32, #tpu.memory_space<vmem>>, vector<1x1x128xf32>
    tpu.vector_store %arg8[%c0_17, %c0_18, %c0_19], %21 {strides = array<i32>} : memref<1x1x128xf32, #tpu.memory_space<vmem>>, vector<1x1x128xf32>,
    return
  }
  func.func @transform_0(%arg0: i32) -> (i32, i32) {
    %c0_i32 = arith.constant 0 : i32
    %c0_i32_0 = arith.constant 0 : i32
    return %arg0, %c0_i32 : i32, i32
  }
  func.func @transform_1(%arg0: i32) -> (i32, i32) {
    %c0_i32 = arith.constant 0 : i32
    %c0_i32_0 = arith.constant 0 : i32
    %c0_i32_1 = arith.constant 0 : i32
    return %c0_i32, %c0_i32_0 : i32, i32
  }
  func.func @transform_2(%arg0: i32) -> (i32, i32) {
    %c0_i32 = arith.constant 0 : i32
    %c0_i32_0 = arith.constant 0 : i32
    %c0_i32_1 = arith.constant 0 : i32
    return %c0_i32, %c0_i32_0 : i32, i32
  }
  func.func @transform_3(%arg0: i32) -> (i32, i32) {
    %c0_i32 = arith.constant 0 : i32
    %c0_i32_0 = arith.constant 0 : i32
    %c0_i32_1 = arith.constant 0 : i32
    return %c0_i32, %c0_i32_0 : i32, i32
  }
  func.func @transform_4(%arg0: i32) -> (i32, i32) {
    %c0_i32 = arith.constant 0 : i32
    %c0_i32_0 = arith.constant 0 : i32
    %c0_i32_1 = arith.constant 0 : i32
    return %c0_i32, %c0_i32_0 : i32, i32
  }
  func.func @transform_5(%arg0: i32) -> (i32, i32) {
    %c0_i32 = arith.constant 0 : i32
    %c0_i32_0 = arith.constant 0 : i32
    %c0_i32_1 = arith.constant 0 : i32
    return %c0_i32, %c0_i32_0 : i32, i32
  }
  func.func @transform_6(%arg0: i32) -> (i32, i32) {
    %c0_i32 = arith.constant 0 : i32
    %c0_i32_0 = arith.constant 0 : i32
    %c0_i32_1 = arith.constant 0 : i32
    return %c0_i32, %c0_i32_0 : i32, i32
  }
  func.func @transform_7(%arg0: i32) -> (i32, i32, i32) {
    %c0_i32 = arith.constant 0 : i32
    %c0_i32_0 = arith.constant 0 : i32
    %c0_i32_1 = arith.constant 0 : i32
    return %arg0, %c0_i32, %c0_i32_0 : i32, i32, i32
  }
}

</mosaic_0001>

<llo_original>
// kernel: tpu_custom_call.1
$region0: #{tpu_custom_call.1}
  #allocation0 [shape = 'u32[]', space=smem, size = 0x4, offset = 0x4, fixed_abs, tag = 'smem constant byte address 0x4 - core index']
  #allocation1 [shape = 'u32[144,128]{1,0:T(1,128)}', space=vmem, size = 0x12000, scoped, tag = 'internal scratch']
  #allocation2 [shape = 'f32[1,1]{1,0:T(1,128)S(1)}', space=vmem, size = 0x200, scoped, tag = 'scoped memory for tpu_custom_call.1']
  %s0 = inlined_call_operand.vmem [shape: bf16[128,16], index: 0, kind: input, shape index: {}]
  %s1 = inlined_call_operand.vmem [shape: bf16[16,128], index: 1, kind: input, shape index: {}]
  %s2 = inlined_call_operand.vmem [shape: f32[1,128], index: 2, kind: input, shape index: {}]
  %s3 = inlined_call_operand.vmem [shape: bf16[128,128], index: 3, kind: input, shape index: {}]
  %s4 = inlined_call_operand.vmem [shape: f32[1,128], index: 4, kind: input, shape index: {}]
  %s5 = inlined_call_operand.vmem [shape: f32[1,128], index: 5, kind: input, shape index: {}]
  %s6 = inlined_call_operand.<no memory space> [shape: f32[1,1], index: 6, kind: input, shape index: {}]
  %s7 = inlined_call_operand.hbm [shape: f32[1,1,128], index: 7, kind: output, shape index: {}]
  %s8 = sld [smem:[#allocation0]]
  $region38: #{tpu_custom_call.1} parent=0
    _
  %s10 = ssub.s32 1, %s8
  %s11 = scalar_select 0, %s10, %s8
  %v12 = vstv %s6
  %13 = vst [vmem:[#allocation2] sm:$0x1] %v12
  $region1: #{tpu_custom_call.1} parent=0
    #allocation3 [shape = 'u8[512]{0}', space=vmem, size = 0x400, scoped, tag = 'output window, operand 0, single buffered']
    #allocation4 [shape = 's32[1]{0}', space=sflag, size = 0x4, scoped, tag = 'scoped memory for tpu_custom_call.1']
    %14 = vsyncpa [#allocation4], 0
    // Predicated region
    $region2: #{tpu_custom_call.1} parent=1 // pred_check
      _
    $region3: #{tpu_custom_call.1} parent=1 // pred_check_branch
      %16 = sbr.rel (0) target = $region5
    $region4: #{tpu_custom_call.1} parent=1 // pred_region
      _
    $region5: #{tpu_custom_call.1} parent=1 // pred_fallthru
      _
    // Predicated region
    $region6: #{tpu_custom_call.1} parent=1 // pred_check
      _
    $region7: #{tpu_custom_call.1} parent=1 // pred_check_branch
      %18 = sbr.rel (0) target = $region9
    $region8: #{tpu_custom_call.1} parent=1 // pred_region
      _
    $region9: #{tpu_custom_call.1} parent=1 // pred_fallthru
      _
    // Predicated region
    $region10: #{tpu_custom_call.1} parent=1 // pred_check
      _
    $region11: #{tpu_custom_call.1} parent=1 // pred_check_branch
      %20 = sbr.rel (0) target = $region13
    $region12: #{tpu_custom_call.1} parent=1 // pred_region
      _
    $region13: #{tpu_custom_call.1} parent=1 // pred_fallthru
      _
    // Predicated region
    $region14: #{tpu_custom_call.1} parent=1 // pred_check
      _
    $region15: #{tpu_custom_call.1} parent=1 // pred_check_branch
      %22 = sbr.rel (0) target = $region17
    $region16: #{tpu_custom_call.1} parent=1 // pred_region
      _
    $region17: #{tpu_custom_call.1} parent=1 // pred_fallthru
      _
    // Predicated region
    $region18: #{tpu_custom_call.1} parent=1 // pred_check
      _
    $region19: #{tpu_custom_call.1} parent=1 // pred_check_branch
      %24 = sbr.rel (0) target = $region21
    $region20: #{tpu_custom_call.1} parent=1 // pred_region
      _
    $region21: #{tpu_custom_call.1} parent=1 // pred_fallthru
      _
    // Predicated region
    $region22: #{tpu_custom_call.1} parent=1 // pred_check
      _
    $region23: #{tpu_custom_call.1} parent=1 // pred_check_branch
      %26 = sbr.rel (0) target = $region25
    $region24: #{tpu_custom_call.1} parent=1 // pred_region
      _
    $region25: #{tpu_custom_call.1} parent=1 // pred_fallthru
      _
    // Predicated region
    $region26: #{tpu_custom_call.1} parent=1 // pred_check
      _
    $region27: #{tpu_custom_call.1} parent=1 // pred_check_branch
      %28 = sbr.rel (0) target = $region29
    $region28: #{tpu_custom_call.1} parent=1 // pred_region
      _
    $region29: #{tpu_custom_call.1} parent=1 // pred_fallthru
      _
    %v30 = vld [vmem:[%s0] sm:$0xf]
    %v31 = vld [vmem:[%s0 + $0x4] sm:$0xf]
    %v32 = vld [vmem:[%s0 + $0x8] sm:$0xf]
    %v33 = vld [vmem:[%s0 + $0xc] sm:$0xf]
    %v34 = vld [vmem:[%s0 + $0x10] sm:$0xf]
    %v35 = vld [vmem:[%s0 + $0x14] sm:$0xf]
    %v36 = vld [vmem:[%s0 + $0x18] sm:$0xf]
    %v37 = vld [vmem:[%s0 + $0x1c] sm:$0xf]
    %v38 = vld [vmem:[%s0 + $0x20] sm:$0xf]
    %v39 = vld [vmem:[%s0 + $0x24] sm:$0xf]
    %v40 = vld [vmem:[%s0 + $0x28] sm:$0xf]
    %v41 = vld [vmem:[%s0 + $0x2c] sm:$0xf]
    %v42 = vld [vmem:[%s0 + $0x30] sm:$0xf]
    %v43 = vld [vmem:[%s0 + $0x34] sm:$0xf]
    %v44 = vld [vmem:[%s0 + $0x38] sm:$0xf]
    %v45 = vld [vmem:[%s0 + $0x3c] sm:$0xf]
    %v46 = vld [vmem:[%s1] sm:$0xf]
    %v47 = vld [vmem:[%s1 + $0x4] sm:$0xf]
    %v48 = vld [vmem:[%s2] sm:$0x1]
    %v50 = vlaneseq
    %v51 = vshrl.u32 %v50, 7
    %v52 = vsub.s32 0, %v51
    %v53 = vrot.slane %v48, %v52
    %v71 = vunpack.c.l.b16 %v30
    %v72 = vunpack.c.l.b16 %v31
    %v73 = vunpack.c.l.b16 %v32
    %v74 = vunpack.c.l.b16 %v33
    %v75 = vunpack.c.l.b16 %v34
    %v76 = vunpack.c.l.b16 %v35
    %v77 = vunpack.c.l.b16 %v36
    %v78 = vunpack.c.l.b16 %v37
    %v79 = vunpack.c.l.b16 %v38
    %v80 = vunpack.c.l.b16 %v39
    %v81 = vunpack.c.l.b16 %v40
    %v82 = vunpack.c.l.b16 %v41
    %v83 = vunpack.c.l.b16 %v42
    %v84 = vunpack.c.l.b16 %v43
    %v85 = vunpack.c.l.b16 %v44
    %v86 = vunpack.c.l.b16 %v45
    %v87 = vpack.c.b16 %v72, %v71
    %v88 = vpack.c.b16 %v74, %v73
    %v89 = vpack.c.b16 %v76, %v75
    %v90 = vpack.c.b16 %v78, %v77
    %v91 = vpack.c.b16 %v80, %v79
    %v92 = vpack.c.b16 %v82, %v81
    %v93 = vpack.c.b16 %v84, %v83
    %v94 = vpack.c.b16 %v86, %v85
    %v97 = vunpack.c.l.b16 %v46
    %v98 = vunpack.c.l.b16 %v47
    %v99 = vpack.c.b16 %v98, %v97
    %vm101 = vcmask 130048
    %v103 = vsel %vm101, %v87, 0
    %v106 = vsel %vm101, %v88, 0
    %v109 = vsel %vm101, %v89, 0
    %v112 = vsel %vm101, %v90, 0
    %v115 = vsel %vm101, %v91, 0
    %v118 = vsel %vm101, %v92, 0
    %v121 = vsel %vm101, %v93, 0
    %v124 = vsel %vm101, %v94, 0
    %126 = vmatprep.subr.bf16.mxu0 0
    %127 = vmatpush1.bf16.msra.mxu0 %v99
    %128 = vmatprep.subr.bf16.mxu0 0
    %129 = vmatpush1.bf16.msra.mxu0 0
    %130 = vmatprep.subr.bf16.mxu0 0
    %131 = vmatpush1.bf16.msra.mxu0 0
    %132 = vmatprep.subr.bf16.mxu0 0
    %133 = vmatpush1.bf16.msra.mxu0 0
    %134 = vmatprep.subr.bf16.mxu0 0
    %135 = vmatpush1.bf16.msra.mxu0 0
    %136 = vmatprep.subr.bf16.mxu0 0
    %137 = vmatpush1.bf16.msra.mxu0 0
    %138 = vmatprep.subr.bf16.mxu0 0
    %139 = vmatpush1.bf16.msra.mxu0 0
    %140 = vmatprep.subr.bf16.mxu0 0
    %141 = vmatpush1.bf16.msra.mxu0 0
    %142 = vmatprep.subr.bf16.mxu0 0
    %143 = vmatpush1.bf16.msra.mxu0 0
    %144 = vmatprep.subr.bf16.mxu0 0
    %145 = vmatpush1.bf16.msra.mxu0 0
    %146 = vmatprep.subr.bf16.mxu0 0
    %147 = vmatpush1.bf16.msra.mxu0 0
    %148 = vmatprep.subr.bf16.mxu0 0
    %149 = vmatpush1.bf16.msra.mxu0 0
    %150 = vmatprep.subr.bf16.mxu0 0
    %151 = vmatpush1.bf16.msra.mxu0 0
    %152 = vmatprep.subr.bf16.mxu0 0
    %153 = vmatpush1.bf16.msra.mxu0 0
    %154 = vmatprep.subr.bf16.mxu0 0
    %155 = vmatpush1.bf16.msra.mxu0 0
    %156 = vmatprep.subr.bf16.mxu0 0
    %157 = vmatpush1.bf16.msra.mxu0 0
    %158 = vmatprep.mubr.bf16.mxu0 0
    %159 = vmatmul.mubr.bf16.gmra.mrb[0].mxu0 %v103
    %v160 = vpop.f32.mrb[0].mxu0
    %v161 = vadd.f32 %v53, %v160
    %v162 = vpop.f32.mrb[0].mxu0
    %v163 = vpop.f32.mrb[0].mxu0
    %v164 = vadd.f32 %v53, %v163
    %v165 = vpop.f32.mrb[0].mxu0
    %166 = vmatprep.mubr.bf16.mxu0 0
    %167 = vmatmul.mubr.bf16.gmra.mrb[0].mxu0 %v106
    %v168 = vpop.f32.mrb[0].mxu0
    %v169 = vadd.f32 %v53, %v168
    %v170 = vpop.f32.mrb[0].mxu0
    %v171 = vpop.f32.mrb[0].mxu0
    %v172 = vadd.f32 %v53, %v171
    %v173 = vpop.f32.mrb[0].mxu0
    %174 = vmatprep.mubr.bf16.mxu0 0
    %175 = vmatmul.mubr.bf16.gmra.mrb[0].mxu0 %v109
    %v176 = vpop.f32.mrb[0].mxu0
    %v177 = vadd.f32 %v53, %v176
    %v178 = vpop.f32.mrb[0].mxu0
    %v179 = vpop.f32.mrb[0].mxu0
    %v180 = vadd.f32 %v53, %v179
    %v181 = vpop.f32.mrb[0].mxu0
    %182 = vmatprep.mubr.bf16.mxu0 0
    %183 = vmatmul.mubr.bf16.gmra.mrb[0].mxu0 %v112
    %v184 = vpop.f32.mrb[0].mxu0
    %v185 = vadd.f32 %v53, %v184
    %v186 = vpop.f32.mrb[0].mxu0
    %v187 = vpop.f32.mrb[0].mxu0
    %v188 = vadd.f32 %v53, %v187
    %v189 = vpop.f32.mrb[0].mxu0
    %190 = vmatprep.mubr.bf16.mxu0 0
    %191 = vmatmul.mubr.bf16.gmra.mrb[0].mxu0 %v115
    %v192 = vpop.f32.mrb[0].mxu0
    %v193 = vadd.f32 %v53, %v192
    %v194 = vpop.f32.mrb[0].mxu0
    %v195 = vpop.f32.mrb[0].mxu0
    %v196 = vadd.f32 %v53, %v195
    %v197 = vpop.f32.mrb[0].mxu0
    %198 = vmatprep.mubr.bf16.mxu0 0
    %199 = vmatmul.mubr.bf16.gmra.mrb[0].mxu0 %v118
    %v200 = vpop.f32.mrb[0].mxu0
    %v201 = vadd.f32 %v53, %v200
    %v202 = vpop.f32.mrb[0].mxu0
    %v203 = vpop.f32.mrb[0].mxu0
    %v204 = vadd.f32 %v53, %v203
    %v205 = vpop.f32.mrb[0].mxu0
    %206 = vmatprep.mubr.bf16.mxu0 0
    %207 = vmatmul.mubr.bf16.gmra.mrb[0].mxu0 %v121
    %v208 = vpop.f32.mrb[0].mxu0
    %v209 = vadd.f32 %v53, %v208
    %v210 = vpop.f32.mrb[0].mxu0
    %v211 = vpop.f32.mrb[0].mxu0
    %v212 = vadd.f32 %v53, %v211
    %v213 = vpop.f32.mrb[0].mxu0
    %214 = vmatprep.mubr.bf16.mxu0 0
    %215 = vmatmul.mubr.bf16.gmra.mrb[0].mxu0 %v124
    %v216 = vpop.f32.mrb[0].mxu0
    %v217 = vadd.f32 %v53, %v216
    %v218 = vpop.f32.mrb[0].mxu0
    %v219 = vpop.f32.mrb[0].mxu0
    %v220 = vadd.f32 %v53, %v219
    %v221 = vpop.f32.mrb[0].mxu0
    %222 = vdwg.mxu0
    %v223 = vmax.f32 %v161, 0.0
    %v224 = vmax.f32 %v164, 0.0
    %v225 = vmax.f32 %v169, 0.0
    %v226 = vmax.f32 %v172, 0.0
    %v227 = vmax.f32 %v177, 0.0
    %v228 = vmax.f32 %v180, 0.0
    %v229 = vmax.f32 %v185, 0.0
    %v230 = vmax.f32 %v188, 0.0
    %v231 = vmax.f32 %v193, 0.0
    %v232 = vmax.f32 %v196, 0.0
    %v233 = vmax.f32 %v201, 0.0
    %v234 = vmax.f32 %v204, 0.0
    %v235 = vmax.f32 %v209, 0.0
    %v236 = vmax.f32 %v212, 0.0
    %v237 = vmax.f32 %v217, 0.0
    %v238 = vmax.f32 %v220, 0.0
    %v239 = vpack.c.bf16 %v224, %v223
    %v240 = vpack.c.bf16 %v226, %v225
    %v241 = vpack.c.bf16 %v228, %v227
    %v242 = vpack.c.bf16 %v230, %v229
    %v243 = vpack.c.bf16 %v232, %v231
    %v244 = vpack.c.bf16 %v234, %v233
    %v245 = vpack.c.bf16 %v236, %v235
    %v246 = vpack.c.bf16 %v238, %v237
    %v247 = vld [vmem:[%s3] sm:$0xf]
    %v248 = vld [vmem:[%s3 + $0x4] sm:$0xf]
    %v249 = vld [vmem:[%s3 + $0x8] sm:$0xf]
    %v250 = vld [vmem:[%s3 + $0xc] sm:$0xf]
    %v251 = vld [vmem:[%s3 + $0x10] sm:$0xf]
    %v252 = vld [vmem:[%s3 + $0x14] sm:$0xf]
    %v253 = vld [vmem:[%s3 + $0x18] sm:$0xf]
    %v254 = vld [vmem:[%s3 + $0x1c] sm:$0xf]
    %v255 = vld [vmem:[%s3 + $0x20] sm:$0xf]
    %v256 = vld [vmem:[%s3 + $0x24] sm:$0xf]
    %v257 = vld [vmem:[%s3 + $0x28] sm:$0xf]
    %v258 = vld [vmem:[%s3 + $0x2c] sm:$0xf]
    %v259 = vld [vmem:[%s3 + $0x30] sm:$0xf]
    %v260 = vld [vmem:[%s3 + $0x34] sm:$0xf]
    %v261 = vld [vmem:[%s3 + $0x38] sm:$0xf]
    %v262 = vld [vmem:[%s3 + $0x3c] sm:$0xf]
    %v263 = vld [vmem:[%s4] sm:$0x1]
    %v265 = vlaneseq
    %v266 = vshrl.u32 %v265, 7
    %v267 = vsub.s32 0, %v266
    %v268 = vrot.slane %v263, %v267
    %v286 = vunpack.c.l.b16 %v247
    %v287 = vunpack.c.l.b16 %v248
    %v288 = vunpack.c.l.b16 %v249
    %v289 = vunpack.c.l.b16 %v250
    %v290 = vunpack.c.l.b16 %v251
    %v291 = vunpack.c.l.b16 %v252
    %v292 = vunpack.c.l.b16 %v253
    %v293 = vunpack.c.l.b16 %v254
    %v294 = vunpack.c.l.b16 %v255
    %v295 = vunpack.c.l.b16 %v256
    %v296 = vunpack.c.l.b16 %v257
    %v297 = vunpack.c.l.b16 %v258
    %v298 = vunpack.c.l.b16 %v259
    %v299 = vunpack.c.l.b16 %v260
    %v300 = vunpack.c.l.b16 %v261
    %v301 = vunpack.c.l.b16 %v262
    %v302 = vpack.c.b16 %v287, %v286
    %v303 = vpack.c.b16 %v289, %v288
    %v304 = vpack.c.b16 %v291, %v290
    %v305 = vpack.c.b16 %v293, %v292
    %v306 = vpack.c.b16 %v295, %v294
    %v307 = vpack.c.b16 %v297, %v296
    %v308 = vpack.c.b16 %v299, %v298
    %v309 = vpack.c.b16 %v301, %v300
    %318 = vmatprep.subr.bf16.mxu0 0
    %319 = vmatpush1.bf16.msra.mxu0 %v302
    %320 = vmatprep.subr.bf16.mxu0 0
    %321 = vmatpush1.bf16.msra.mxu0 %v303
    %322 = vmatprep.subr.bf16.mxu0 0
    %323 = vmatpush1.bf16.msra.mxu0 %v304
    %324 = vmatprep.subr.bf16.mxu0 0
    %325 = vmatpush1.bf16.msra.mxu0 %v305
    %326 = vmatprep.subr.bf16.mxu0 0
    %327 = vmatpush1.bf16.msra.mxu0 %v306
    %328 = vmatprep.subr.bf16.mxu0 0
    %329 = vmatpush1.bf16.msra.mxu0 %v307
    %330 = vmatprep.subr.bf16.mxu0 0
    %331 = vmatpush1.bf16.msra.mxu0 %v308
    %332 = vmatprep.subr.bf16.mxu0 0
    %333 = vmatpush1.bf16.msra.mxu0 %v309
    %334 = vmatprep.subr.bf16.mxu0 0
    %335 = vmatpush1.bf16.msra.mxu0 0
    %336 = vmatprep.subr.bf16.mxu0 0
    %337 = vmatpush1.bf16.msra.mxu0 0
    %338 = vmatprep.subr.bf16.mxu0 0
    %339 = vmatpush1.bf16.msra.mxu0 0
    %340 = vmatprep.subr.bf16.mxu0 0
    %341 = vmatpush1.bf16.msra.mxu0 0
    %342 = vmatprep.subr.bf16.mxu0 0
    %343 = vmatpush1.bf16.msra.mxu0 0
    %344 = vmatprep.subr.bf16.mxu0 0
    %345 = vmatpush1.bf16.msra.mxu0 0
    %346 = vmatprep.subr.bf16.mxu0 0
    %347 = vmatpush1.bf16.msra.mxu0 0
    %348 = vmatprep.subr.bf16.mxu0 0
    %349 = vmatpush1.bf16.msra.mxu0 0
    %350 = vmatprep.mubr.bf16.mxu0 0
    %351 = vmatmul.mubr.bf16.gmra.mrb[0].mxu0 %v239
    %v352 = vpop.f32.mrb[0].mxu0
    %v353 = vadd.f32 %v268, %v352
    %v354 = vpop.f32.mrb[0].mxu0
    %v355 = vpop.f32.mrb[0].mxu0
    %v356 = vadd.f32 %v268, %v355
    %v357 = vpop.f32.mrb[0].mxu0
    %358 = vmatprep.mubr.bf16.mxu0 0
    %359 = vmatmul.mubr.bf16.gmra.mrb[0].mxu0 %v240
    %v360 = vpop.f32.mrb[0].mxu0
    %v361 = vadd.f32 %v268, %v360
    %v362 = vpop.f32.mrb[0].mxu0
    %v363 = vpop.f32.mrb[0].mxu0
    %v364 = vadd.f32 %v268, %v363
    %v365 = vpop.f32.mrb[0].mxu0
    %366 = vmatprep.mubr.bf16.mxu0 0
    %367 = vmatmul.mubr.bf16.gmra.mrb[0].mxu0 %v241
    %v368 = vpop.f32.mrb[0].mxu0
    %v369 = vadd.f32 %v268, %v368
    %v370 = vpop.f32.mrb[0].mxu0
    %v371 = vpop.f32.mrb[0].mxu0
    %v372 = vadd.f32 %v268, %v371
    %v373 = vpop.f32.mrb[0].mxu0
    %374 = vmatprep.mubr.bf16.mxu0 0
    %375 = vmatmul.mubr.bf16.gmra.mrb[0].mxu0 %v242
    %v376 = vpop.f32.mrb[0].mxu0
    %v377 = vadd.f32 %v268, %v376
    %v378 = vpop.f32.mrb[0].mxu0
    %v379 = vpop.f32.mrb[0].mxu0
    %v380 = vadd.f32 %v268, %v379
    %v381 = vpop.f32.mrb[0].mxu0
    %382 = vmatprep.mubr.bf16.mxu0 0
    %383 = vmatmul.mubr.bf16.gmra.mrb[0].mxu0 %v243
    %v384 = vpop.f32.mrb[0].mxu0
    %v385 = vadd.f32 %v268, %v384
    %v386 = vpop.f32.mrb[0].mxu0
    %v387 = vpop.f32.mrb[0].mxu0
    %v388 = vadd.f32 %v268, %v387
    %v389 = vpop.f32.mrb[0].mxu0
    %390 = vmatprep.mubr.bf16.mxu0 0
    %391 = vmatmul.mubr.bf16.gmra.mrb[0].mxu0 %v244
    %v392 = vpop.f32.mrb[0].mxu0
    %v393 = vadd.f32 %v268, %v392
    %v394 = vpop.f32.mrb[0].mxu0
    %v395 = vpop.f32.mrb[0].mxu0
    %v396 = vadd.f32 %v268, %v395
    %v397 = vpop.f32.mrb[0].mxu0
    %398 = vmatprep.mubr.bf16.mxu0 0
    %399 = vmatmul.mubr.bf16.gmra.mrb[0].mxu0 %v245
    %v400 = vpop.f32.mrb[0].mxu0
    %v401 = vadd.f32 %v268, %v400
    %v402 = vpop.f32.mrb[0].mxu0
    %v403 = vpop.f32.mrb[0].mxu0
    %v404 = vadd.f32 %v268, %v403
    %v405 = vpop.f32.mrb[0].mxu0
    %406 = vmatprep.mubr.bf16.mxu0 0
    %407 = vmatmul.mubr.bf16.gmra.mrb[0].mxu0 %v246
    %v408 = vpop.f32.mrb[0].mxu0
    %v409 = vadd.f32 %v268, %v408
    %v410 = vpop.f32.mrb[0].mxu0
    %v411 = vpop.f32.mrb[0].mxu0
    %v412 = vadd.f32 %v268, %v411
    %v413 = vpop.f32.mrb[0].mxu0
    %414 = vdwg.mxu0
    %v415 = vmax.f32 %v353, 0.0
    %v416 = vmax.f32 %v356, 0.0
    %v417 = vmax.f32 %v361, 0.0
    %v418 = vmax.f32 %v364, 0.0
    %v419 = vmax.f32 %v369, 0.0
    %v420 = vmax.f32 %v372, 0.0
    %v421 = vmax.f32 %v377, 0.0
    %v422 = vmax.f32 %v380, 0.0
    %v423 = vmax.f32 %v385, 0.0
    %v424 = vmax.f32 %v388, 0.0
    %v425 = vmax.f32 %v393, 0.0
    %v426 = vmax.f32 %v396, 0.0
    %v427 = vmax.f32 %v401, 0.0
    %v428 = vmax.f32 %v404, 0.0
    %v429 = vmax.f32 %v409, 0.0
    %v430 = vmax.f32 %v412, 0.0
    %v431 = vld [vmem:[%s5] sm:$0x1]
    %v432 = vld [vmem:[#allocation2] sm:$0x1]
    %434 = vset.pattern.permute.xlu0 0
    %435 = vperm.xlu0 %434, %v432
    %v436 = vpop.permute.xlu0 %435
    %v438 = vlaneseq
    %v439 = vshrl.u32 %v438, 7
    %v440 = vsub.s32 0, %v439
    %v441 = vrot.slane %v436, %v440
    %442 = vmatprep.subr.mxu0 0.0
    %443 = vmatpush1.xpose.msra.mxu0 %v415
    %444 = vmatprep.subr.mxu0 0.0
    %445 = vmatpush1.xpose.msra.mxu0 %v416
    %446 = vmatprep.subr.mxu0 0.0
    %447 = vmatpush1.xpose.msra.mxu0 %v417
    %448 = vmatprep.subr.mxu0 0.0
    %449 = vmatpush1.xpose.msra.mxu0 %v418
    %450 = vmatprep.subr.mxu0 0.0
    %451 = vmatpush1.xpose.msra.mxu0 %v419
    %452 = vmatprep.subr.mxu0 0.0
    %453 = vmatpush1.xpose.msra.mxu0 %v420
    %454 = vmatprep.subr.mxu0 0.0
    %455 = vmatpush1.xpose.msra.mxu0 %v421
    %456 = vmatprep.subr.mxu0 0.0
    %457 = vmatpush1.xpose.msra.mxu0 %v422
    %458 = vmatprep.subr.mxu0 0.0
    %459 = vmatpush1.xpose.msra.mxu0 %v423
    %460 = vmatprep.subr.mxu0 0.0
    %461 = vmatpush1.xpose.msra.mxu0 %v424
    %462 = vmatprep.subr.mxu0 0.0
    %463 = vmatpush1.xpose.msra.mxu0 %v425
    %464 = vmatprep.subr.mxu0 0.0
    %465 = vmatpush1.xpose.msra.mxu0 %v426
    %466 = vmatprep.subr.mxu0 0.0
    %467 = vmatpush1.xpose.msra.mxu0 %v427
    %468 = vmatprep.subr.mxu0 0.0
    %469 = vmatpush1.xpose.msra.mxu0 %v428
    %470 = vmatprep.subr.mxu0 0.0
    %471 = vmatpush1.xpose.msra.mxu0 %v429
    %472 = vmatprep.subr.mxu0 0.0
    %473 = vmatpush1.xpose.msra.mxu0 %v430
    %474 = vmatprep.subr.mxu0 0.0
    %475 = vmatpush1.xpose.msra.mxu0 0.0
    %476 = vmatprep.subr.mxu0 0.0
    %477 = vmatpush1.xpose.msra.mxu0 0.0
    %478 = vmatprep.subr.mxu0 0.0
    %479 = vmatpush1.xpose.msra.mxu0 0.0
    %480 = vmatprep.subr.mxu0 0.0
    %481 = vmatpush1.xpose.msra.mxu0 0.0
    %482 = vmatprep.subr.mxu0 0.0
    %483 = vmatpush1.xpose.msra.mxu0 0.0
    %484 = vmatprep.subr.mxu0 0.0
    %485 = vmatpush1.xpose.msra.mxu0 0.0
    %486 = vmatprep.subr.mxu0 0.0
    %487 = vmatpush1.xpose.msra.mxu0 0.0
    %488 = vmatprep.subr.mxu0 0.0
    %489 = vmatpush1.xpose.msra.mxu0 0.0
    %490 = vmatprep.subr.mxu0 0.0
    %491 = vmatpush1.xpose.msra.mxu0 0.0
    %492 = vmatprep.subr.mxu0 0.0
    %493 = vmatpush1.xpose.msra.mxu0 0.0
    %494 = vmatprep.subr.mxu0 0.0
    %495 = vmatpush1.xpose.msra.mxu0 0.0
    %496 = vmatprep.subr.mxu0 0.0
    %497 = vmatpush1.xpose.msra.mxu0 0.0
    %498 = vmatprep.subr.mxu0 0.0
    %499 = vmatpush1.xpose.msra.mxu0 0.0
    %500 = vmatprep.subr.mxu0 0.0
    %501 = vmatpush1.xpose.msra.mxu0 0.0
    %502 = vmatprep.subr.mxu0 0.0
    %503 = vmatpush1.xpose.msra.mxu0 0.0
    %504 = vmatprep.subr.mxu0 0.0
    %505 = vmatpush1.xpose.msra.mxu0 0.0
    %506 = vmatprep.mubr.f32.mxu0 0.0
    %507 = vmatmul.mubr.f32.gmra.mrb[0].mxu0 %v431
    %v508 = vpop.f32.mrb[0].mxu0
    %v509 = vadd.f32 %v441, %v508
    %v510 = vpop.f32.mrb[0].mxu0
    %511 = vdwg.mxu0
    %512 = vst [vmem:[#allocation3] sm:$0x1] %v509
    // Predicated region
    $region30: #{tpu_custom_call.1} parent=1 // pred_check
      _
    $region31: #{tpu_custom_call.1} parent=1 // pred_check_branch
      %514 = sbr.rel (0) target = $region33
    $region32: #{tpu_custom_call.1} parent=1 // pred_region
      %s516 = ssub.s32 16, 16
      %517 = vsyncadd [#allocation4], %s516
      %s519 = sshll.u32 [#allocation3], 4
      %s520 = int_to_ptr.vmem [resolvable:$true] %s519
      %522 = dma.vmem_to_hbm [thread:$0]  %s520, 16, %s7, [#allocation4]
    $region33: #{tpu_custom_call.1} parent=1 // pred_fallthru
      _
    // Predicated region
    $region34: #{tpu_custom_call.1} parent=1 // pred_check
      _
    $region35: #{tpu_custom_call.1} parent=1 // pred_check_branch
      %524 = sbr.rel (0) target = $region37
    $region36: #{tpu_custom_call.1} parent=1 // pred_region
      %525 = dma.done [#allocation4], 16
    $region37: #{tpu_custom_call.1} parent=1 // pred_fallthru
      _
    %526 = vsyncpa [#allocation4], 1

</llo_original>
